<compile_context>
chip_gen: v6e
topology: v6e:2x2x1
jax: 0.10.0
libtpu: 0.0.40
codegen_flags: <defaults>
</compile_context>

<pallas_src>
import functools

import jax
import jax.numpy as jnp
from jax.experimental import pallas as pl
from jax.experimental.pallas import tpu as pltpu


def _round_up(v, m):
    return (v + m - 1) // m * m


# ---------------------------------------------------------------------------
# Fused Pallas kernel: conv(2,1)+couple_linear (pre-folded) and
# single_linear+softmax, one batch element per grid step.
# ---------------------------------------------------------------------------
def _composer_kernel(xp_ref, wz_ref, wx_ref, bc_ref, ws_ref, bs_ref,
                     couple_ref, single_ref):
    xp = xp_ref[0]                      # (l+2, d_pad) bf16, zero-framed rows
    zx = xp[:-1]                        # zero_x rows: [0, x_0 .. x_{l-1}]
    xz = xp[1:]                         # x_zero rows: [x_0 .. x_{l-1}, 0]

    # couple = (zero_x @ W0 + x_zero @ W1 + b_conv) @ WL + bL, with the conv
    # taps folded through couple_linear at trace time (wz = W0@WL, wx = W1@WL,
    # bc = b_conv@WL + bL).  bf16 operands, f32 accumulation.
    couple = (jnp.dot(zx, wz_ref[...], preferred_element_type=jnp.float32)
              + jnp.dot(xz, wx_ref[...], preferred_element_type=jnp.float32)
              + bc_ref[...])
    couple_ref[0] = couple.astype(couple_ref.dtype)

    # single = softmax(x @ Ws + bs); padded class columns carry a -1e30 bias
    # so they vanish under exp().
    xs = xp[1:-1]                       # the original x rows
    logits = (jnp.dot(xs, ws_ref[...], preferred_element_type=jnp.float32)
              + bs_ref[...])
    mx = logits.max(axis=-1, keepdims=True)
    e = jnp.exp(logits - mx)
    inv = pl.reciprocal(e.sum(axis=-1, keepdims=True), approx=True)
    single_ref[0] = (e * inv).astype(single_ref.dtype)


# ---------------------------------------------------------------------------
# Parameters (deterministic; module-faithful shapes, weights pre-transposed
# for row-major GEMM) and trace-time packing (fold + pad + bf16).
# ---------------------------------------------------------------------------
def make_params(key, input_dim, couple_dim, num_class, dtype=jnp.float32):
    num_couples = num_class ** 2
    ks = jax.random.split(key, 8)
    s = 0.1
    # nn.Linear(input_dim, num_class): weight (num_class, input_dim) -> stored transposed
    ws = s * jax.random.normal(ks[0], (input_dim, num_class), dtype)
    bs = s * jax.random.normal(ks[1], (1, num_class), dtype)
    # nn.Conv2d(input_dim, couple_dim, (2,1)): weight (couple_dim, input_dim, 2, 1)
    #   w0 = weight[:, :, 0, 0].T   w1 = weight[:, :, 1, 0].T
    w0 = s * jax.random.normal(ks[2], (input_dim, couple_dim), dtype)
    w1 = s * jax.random.normal(ks[3], (input_dim, couple_dim), dtype)
    bc = s * jax.random.normal(ks[4], (1, couple_dim), dtype)
    # nn.Linear(couple_dim, num_couples)
    wl = s * jax.random.normal(ks[5], (couple_dim, num_couples), dtype)
    bl = s * jax.random.normal(ks[6], (1, num_couples), dtype)
    # TODO(synk): upscale_proj (Linear(input_dim, couple_dim)) is declared in
    # __init__ but never used in forward; not materialized here.
    return dict(ws=ws, bs=bs, w0=w0, w1=w1, bc=bc, wl=wl, bl=bl)


def pack_params(params, input_dim, num_class):
    """Fold couple_conv through couple_linear, pad to 128-lane granule, bf16."""
    num_couples = num_class ** 2
    d_pad = _round_up(input_dim, 128)
    c2_pad = _round_up(num_couples, 128)
    nc_pad = _round_up(num_class, 128)

    wz = params["w0"] @ params["wl"]                 # (d, num_couples)
    wx = params["w1"] @ params["wl"]                 # (d, num_couples)
    b2 = params["bc"] @ params["wl"] + params["bl"]  # (1, num_couples)

    wz_p = (jnp.zeros((d_pad, c2_pad), jnp.bfloat16)
            .at[:input_dim, :num_couples].set(wz.astype(jnp.bfloat16)))
    wx_p = (jnp.zeros((d_pad, c2_pad), jnp.bfloat16)
            .at[:input_dim, :num_couples].set(wx.astype(jnp.bfloat16)))
    b2_p = (jnp.zeros((1, c2_pad), jnp.float32)
            .at[:, :num_couples].set(b2.astype(jnp.float32)))

    ws_p = (jnp.zeros((d_pad, nc_pad), jnp.bfloat16)
            .at[:input_dim, :num_class].set(params["ws"].astype(jnp.bfloat16)))
    # Padded class columns get a huge negative bias so softmax ignores them.
    bs_p = (jnp.full((1, nc_pad), -1e30, jnp.float32)
            .at[:, :num_class].set(params["bs"].astype(jnp.float32)))

    return dict(wz=wz_p, wx=wx_p, b2=b2_p, ws=ws_p, bs=bs_p)


# ---------------------------------------------------------------------------
# Forward wrapper
# ---------------------------------------------------------------------------
@functools.partial(jax.jit, static_argnames=("num_class",))
def composer_forward(x, packed, num_class):
    n, l, d = x.shape
    num_couples = num_class ** 2
    d_pad, c2_pad = packed["wz"].shape
    nc_pad = packed["ws"].shape[1]

    # Single zero-framed, lane-padded bf16 copy of x in HBM; rows 0 and l+1 are
    # the conv's zero pads.  No duplicated zero_x / x_zero slabs.
    xp = jnp.pad(x.astype(jnp.bfloat16), ((0, 0), (1, 1), (0, d_pad - d)))

    couple_pad, single_pad = pl.pallas_call(
        _composer_kernel,
        grid=(n,),
        in_specs=(
            pl.BlockSpec((1, l + 2, d_pad), lambda b: (b, 0, 0)),   # activations
            pl.BlockSpec((d_pad, c2_pad), lambda b: (0, 0)),        # wz (resident)
            pl.BlockSpec((d_pad, c2_pad), lambda b: (0, 0)),        # wx (resident)
            pl.BlockSpec((1, c2_pad), lambda b: (0, 0)),            # couple bias
            pl.BlockSpec((d_pad, nc_pad), lambda b: (0, 0)),        # ws (resident)
            pl.BlockSpec((1, nc_pad), lambda b: (0, 0)),            # single bias
        ),
        out_specs=(
            pl.BlockSpec((1, l + 1, c2_pad), lambda b: (b, 0, 0)),
            pl.BlockSpec((1, l, nc_pad), lambda b: (b, 0, 0)),
        ),
        out_shape=(
            jax.ShapeDtypeStruct((n, l + 1, c2_pad), jnp.float32),
            jax.ShapeDtypeStruct((n, l, nc_pad), jnp.float32),
        ),
        compiler_params=pltpu.CompilerParams(
            dimension_semantics=("parallel",),
            vmem_limit_bytes=32 * 1024 * 1024,
        ),
    )(xp, packed["wz"], packed["wx"], packed["b2"], packed["ws"], packed["bs"])

    couple = couple_pad[:, :, :num_couples]
    single = single_pad[:, :, :num_class]

    # Mirror the torch module's `print(single.shape)`.
    print(single.shape)
    return couple, single


# ---------------------------------------------------------------------------
if __name__ == "__main__":
    input_dim, couple_dim, num_class = 32, 16, 8
    n, l = 2, 8

    key = jax.random.PRNGKey(0)
    kx, kp = jax.random.split(key)
    x = jax.random.normal(kx, (n, l, input_dim), jnp.float32)
    params = make_params(kp, input_dim, couple_dim, num_class)
    packed = pack_params(params, input_dim, num_class)

    couple, single = composer_forward(x, packed, num_class)
    jax.block_until_ready((couple, single))

    # Pure-JAX f32 reference of the torch module math.
    zero = jnp.zeros((n, 1, input_dim), jnp.float32)
    zero_x = jnp.concatenate([zero, x], axis=1)        # (n, l+1, d)
    x_zero = jnp.concatenate([x, zero], axis=1)        # (n, l+1, d)
    map_ref = zero_x @ params["w0"] + x_zero @ params["w1"] + params["bc"]
    couple_ref = map_ref @ params["wl"] + params["bl"]
    single_ref = jax.nn.softmax(x @ params["ws"] + params["bs"], axis=-1)

    assert couple.shape == (n, l + 1, num_class ** 2)
    assert single.shape == (n, l, num_class)
    # bf16 matmuls vs f32 reference -> loose tolerance.
    assert jnp.allclose(couple, couple_ref, atol=5e-2, rtol=5e-2), \
        float(jnp.abs(couple - couple_ref).max())
    assert jnp.allclose(single, single_ref, atol=2e-2, rtol=2e-2), \
        float(jnp.abs(single - single_ref).max())

    print("KERNEL_OK")
</pallas_src>

<mosaic_0001>
module attributes {stable_mosaic.version = 11 : i64} {
  func.func @_composer_kernel(%arg0: i32, %arg1: memref<1x10x128xbf16, #tpu.memory_space<vmem>>, %arg2: memref<128x128xbf16, #tpu.memory_space<vmem>>, %arg3: memref<128x128xbf16, #tpu.memory_space<vmem>>, %arg4: memref<1x128xf32, #tpu.memory_space<vmem>>, %arg5: memref<128x128xbf16, #tpu.memory_space<vmem>>, %arg6: memref<1x128xf32, #tpu.memory_space<vmem>>, %arg7: memref<1x9x128xf32, #tpu.memory_space<vmem>>, %arg8: memref<1x8x128xf32, #tpu.memory_space<vmem>>) attributes {dimension_semantics = [#tpu.dimension_semantics<parallel>], iteration_bounds = array<i64: 2>, scalar_prefetch = 0 : i64, scratch_operands = 0 : i64, tpu.core_type = #tpu.core_type<tc>, window_params = [{transform_indices = @transform_0, window_bounds = array<i64: 1, 10, 128>}, {pipeline_mode = #tpu.pipeline_mode<synchronous>, transform_indices = @transform_1, window_bounds = array<i64: 128, 128>}, {pipeline_mode = #tpu.pipeline_mode<synchronous>, transform_indices = @transform_2, window_bounds = array<i64: 128, 128>}, {pipeline_mode = #tpu.pipeline_mode<synchronous>, transform_indices = @transform_3, window_bounds = array<i64: 1, 128>}, {pipeline_mode = #tpu.pipeline_mode<synchronous>, transform_indices = @transform_4, window_bounds = array<i64: 128, 128>}, {pipeline_mode = #tpu.pipeline_mode<synchronous>, transform_indices = @transform_5, window_bounds = array<i64: 1, 128>}, {transform_indices = @transform_6, window_bounds = array<i64: 1, 9, 128>}, {transform_indices = @transform_7, window_bounds = array<i64: 1, 8, 128>}]} {
    %c0 = arith.constant 0 : index
    %c0_0 = arith.constant 0 : index
    %c0_1 = arith.constant 0 : index
    %0 = vector.load %arg1[%c0, %c0_0, %c0_1] : memref<1x10x128xbf16, #tpu.memory_space<vmem>>, vector<1x10x128xbf16>
    %1 = vector.shape_cast %0 : vector<1x10x128xbf16> to vector<10x128xbf16>
    %2 = vector.extract_strided_slice %1 {offsets = [0, 0], sizes = [9, 128], strides = [1, 1]} : vector<10x128xbf16> to vector<9x128xbf16>
    %3 = vector.extract_strided_slice %1 {offsets = [1, 0], sizes = [9, 128], strides = [1, 1]} : vector<10x128xbf16> to vector<9x128xbf16>
    %c0_2 = arith.constant 0 : index
    %c0_3 = arith.constant 0 : index
    %4 = vector.load %arg2[%c0_2, %c0_3] : memref<128x128xbf16, #tpu.memory_space<vmem>>, vector<128x128xbf16>
    %cst = arith.constant dense<0.000000e+00> : vector<9x128xf32>
    %5 = tpu.matmul %2, %4, %cst {dimension_numbers = #tpu.dot_dimension_numbers<[1], [0], [0], [1], [0, 0, 1, 1], [], []>} : vector<9x128xbf16>, vector<128x128xbf16>, vector<9x128xf32> -> vector<9x128xf32>
    %c0_4 = arith.constant 0 : index
    %c0_5 = arith.constant 0 : index
    %6 = vector.load %arg3[%c0_4, %c0_5] : memref<128x128xbf16, #tpu.memory_space<vmem>>, vector<128x128xbf16>
    %cst_6 = arith.constant dense<0.000000e+00> : vector<9x128xf32>
    %7 = tpu.matmul %3, %6, %cst_6 {dimension_numbers = #tpu.dot_dimension_numbers<[1], [0], [0], [1], [0, 0, 1, 1], [], []>} : vector<9x128xbf16>, vector<128x128xbf16>, vector<9x128xf32> -> vector<9x128xf32>
    %8 = arith.addf %5, %7 : vector<9x128xf32>
    %c0_7 = arith.constant 0 : index
    %c0_8 = arith.constant 0 : index
    %9 = vector.load %arg4[%c0_7, %c0_8] : memref<1x128xf32, #tpu.memory_space<vmem>>, vector<1x128xf32>
    %10 = vector.broadcast %9 : vector<1x128xf32> to vector<9x128xf32>
    %11 = arith.addf %8, %10 : vector<9x128xf32>
    %c0_9 = arith.constant 0 : index
    %c0_10 = arith.constant 0 : index
    %c0_11 = arith.constant 0 : index
    %12 = vector.load %arg7[%c0_9, %c0_10, %c0_11] : memref<1x9x128xf32, #tpu.memory_space<vmem>>, vector<1x9x128xf32>
    %13 = vector.shape_cast %12 : vector<1x9x128xf32> to vector<9x128xf32>
    %14 = vector.shape_cast %11 : vector<9x128xf32> to vector<1x9x128xf32>
    tpu.vector_store %arg7[%c0_9, %c0_10, %c0_11], %14 {strides = array<i32>} : memref<1x9x128xf32, #tpu.memory_space<vmem>>, vector<1x9x128xf32>,
    %15 = vector.extract_strided_slice %1 {offsets = [1, 0], sizes = [8, 128], strides = [1, 1]} : vector<10x128xbf16> to vector<8x128xbf16>
    %c0_12 = arith.constant 0 : index
    %c0_13 = arith.constant 0 : index
    %16 = vector.load %arg5[%c0_12, %c0_13] : memref<128x128xbf16, #tpu.memory_space<vmem>>, vector<128x128xbf16>
    %cst_14 = arith.constant dense<0.000000e+00> : vector<8x128xf32>
    %17 = tpu.matmul %15, %16, %cst_14 {dimension_numbers = #tpu.dot_dimension_numbers<[1], [0], [0], [1], [0, 0, 1, 1], [], []>} : vector<8x128xbf16>, vector<128x128xbf16>, vector<8x128xf32> -> vector<8x128xf32>
    %c0_15 = arith.constant 0 : index
    %c0_16 = arith.constant 0 : index
    %18 = vector.load %arg6[%c0_15, %c0_16] : memref<1x128xf32, #tpu.memory_space<vmem>>, vector<1x128xf32>
    %19 = vector.broadcast %18 : vector<1x128xf32> to vector<8x128xf32>
    %20 = arith.addf %17, %19 : vector<8x128xf32>
    %cst_17 = arith.constant dense<0xFF800000> : vector<8xf32>
    %21 = vector.multi_reduction <maximumf>, %20, %cst_17 [1] : vector<8x128xf32> to vector<8xf32>
    %22 = vector.shape_cast %21 : vector<8xf32> to vector<8x1xf32>
    %23 = vector.broadcast %22 : vector<8x1xf32> to vector<8x128xf32>
    %24 = arith.subf %20, %23 : vector<8x128xf32>
    %25 = math.exp %24 : vector<8x128xf32>
    %cst_18 = arith.constant dense<0.000000e+00> : vector<8xf32>
    %26 = vector.multi_reduction <add>, %25, %cst_18 [1] : vector<8x128xf32> to vector<8xf32>
    %27 = vector.shape_cast %26 : vector<8xf32> to vector<8x1xf32>
    %28 = tpu.reciprocal %27 {approx = true} : vector<8x1xf32> -> vector<8x1xf32>
    %29 = vector.broadcast %28 : vector<8x1xf32> to vector<8x128xf32>
    %30 = arith.mulf %25, %29 : vector<8x128xf32>
    %c0_19 = arith.constant 0 : index
    %c0_20 = arith.constant 0 : index
    %c0_21 = arith.constant 0 : index
    %31 = vector.load %arg8[%c0_19, %c0_20, %c0_21] : memref<1x8x128xf32, #tpu.memory_space<vmem>>, vector<1x8x128xf32>
    %32 = vector.shape_cast %31 : vector<1x8x128xf32> to vector<8x128xf32>
    %33 = vector.shape_cast %30 : vector<8x128xf32> to vector<1x8x128xf32>
    tpu.vector_store %arg8[%c0_19, %c0_20, %c0_21], %33 {strides = array<i32>} : memref<1x8x128xf32, #tpu.memory_space<vmem>>, vector<1x8x128xf32>,
    return
  }
  func.func @transform_0(%arg0: i32) -> (i32, i32, i32) {
    %c0_i32 = arith.constant 0 : i32
    %c0_i32_0 = arith.constant 0 : i32
    %c0_i32_1 = arith.constant 0 : i32
    return %arg0, %c0_i32, %c0_i32_0 : i32, i32, i32
  }
  func.func @transform_1(%arg0: i32) -> (i32, i32) {
    %c0_i32 = arith.constant 0 : i32
    %c0_i32_0 = arith.constant 0 : i32
    %c0_i32_1 = arith.constant 0 : i32
    return %c0_i32, %c0_i32_0 : i32, i32
  }
  func.func @transform_2(%arg0: i32) -> (i32, i32) {
    %c0_i32 = arith.constant 0 : i32
    %c0_i32_0 = arith.constant 0 : i32
    %c0_i32_1 = arith.constant 0 : i32
    return %c0_i32, %c0_i32_0 : i32, i32
  }
  func.func @transform_3(%arg0: i32) -> (i32, i32) {
    %c0_i32 = arith.constant 0 : i32
    %c0_i32_0 = arith.constant 0 : i32
    %c0_i32_1 = arith.constant 0 : i32
    return %c0_i32, %c0_i32_0 : i32, i32
  }
  func.func @transform_4(%arg0: i32) -> (i32, i32) {
    %c0_i32 = arith.constant 0 : i32
    %c0_i32_0 = arith.constant 0 : i32
    %c0_i32_1 = arith.constant 0 : i32
    return %c0_i32, %c0_i32_0 : i32, i32
  }
  func.func @transform_5(%arg0: i32) -> (i32, i32) {
    %c0_i32 = arith.constant 0 : i32
    %c0_i32_0 = arith.constant 0 : i32
    %c0_i32_1 = arith.constant 0 : i32
    return %c0_i32, %c0_i32_0 : i32, i32
  }
  func.func @transform_6(%arg0: i32) -> (i32, i32, i32) {
    %c0_i32 = arith.constant 0 : i32
    %c0_i32_0 = arith.constant 0 : i32
    %c0_i32_1 = arith.constant 0 : i32
    return %arg0, %c0_i32, %c0_i32_0 : i32, i32, i32
  }
  func.func @transform_7(%arg0: i32) -> (i32, i32, i32) {
    %c0_i32 = arith.constant 0 : i32
    %c0_i32_0 = arith.constant 0 : i32
    %c0_i32_1 = arith.constant 0 : i32
    return %arg0, %c0_i32, %c0_i32_0 : i32, i32, i32
  }
}

</mosaic_0001>

<llo_original>
// kernel: composer_forward.1
$region0: #{composer_forward.1}
  #allocation0 [shape = 'u32[]', space=smem, size = 0x4, offset = 0x4, fixed_abs, tag = 'smem constant byte address 0x4 - core index']
  #allocation1 [shape = 'u32[144,128]{1,0:T(1,128)}', space=vmem, size = 0x12000, scoped, tag = 'internal scratch']
  %s0 = inlined_call_operand.vmem [shape: bf16[2,10,128], index: 0, kind: input, shape index: {}]
  %s1 = inlined_call_operand.hbm [shape: bf16[128,128], index: 1, kind: input, shape index: {}]
  %s2 = inlined_call_operand.hbm [shape: bf16[128,128], index: 2, kind: input, shape index: {}]
  %s3 = inlined_call_operand.vmem [shape: f32[1,128], index: 3, kind: input, shape index: {}]
  %s4 = inlined_call_operand.hbm [shape: bf16[128,128], index: 4, kind: input, shape index: {}]
  %s5 = inlined_call_operand.vmem [shape: f32[1,128], index: 5, kind: input, shape index: {}]
  %s6 = inlined_call_operand.vmem [shape: f32[2,9,128], index: 6, kind: output, shape index: {0}]
  %s7 = inlined_call_operand.hbm [shape: f32[2,8,128], index: 7, kind: output, shape index: {1}]
  %8 = xla_tuple %s6, %s7
  %s9 = sld [smem:[#allocation0]]
  $region77: #{composer_forward.1} parent=0
    _
  %s11 = ssub.s32 1, %s9
  %s12 = scalar_select 0, %s11, %s9
  $region1: #{composer_forward.1} parent=0
    #allocation2 [shape = 'u8[32768]{0}', space=vmem, size = 0x8000, scoped, tag = 'input window, operand 1, single buffered']
    #allocation3 [shape = 's32[2]{0}', space=sflag, size = 0x8, scoped, tag = 'scoped memory for composer_forward.1']
    #allocation4 [shape = 's32[2]{0}', space=sflag, size = 0x8, scoped, tag = 'scoped memory for composer_forward.1']
    #allocation5 [shape = 'u8[32768]{0}', space=vmem, size = 0x8000, scoped, tag = 'input window, operand 2, single buffered']
    #allocation6 [shape = 's32[1]{0}', space=sflag, size = 0x4, scoped, tag = 'scoped memory for composer_forward.1']
    #allocation7 [shape = 'u8[32768]{0}', space=vmem, size = 0x8000, scoped, tag = 'input window, operand 4, single buffered']
    #allocation8 [shape = 'u8[8192]{0}', space=vmem, size = 0x2000, scoped, tag = 'output window, operand 1']
    %13 = vsyncpa [#allocation3], 0
    %14 = vsyncpa [#allocation6], 0
    %15 = vsyncpa [#allocation4], 0
    %s16 = scalar_lea.sflag [#allocation4], 1
    %17 = vsyncpa %s16, 0
    loop: start=0, step=1, limit=4
    $region2: #{composer_forward.1} parent=1 // loop_pre_header
      _
    $region3: #{composer_forward.1} parent=1 // loop_header
      %s19 = sphi 0, %s23
      %p20 = scmp.ge.s32.totalorder %s19, 4
      %s29 = sphi 0, %s31
      %s32 = sphi 0, %s29
      %s33 = sphi 0, %s32
      %s49 = sphi 0, %s33
      %s53 = sphi 0, %s53
      %s55 = sphi 0, %s53
      %s56 = sphi 0, %s55
      %s70 = sphi 0, %s56
      %s74 = sphi 0, %s74
      %s76 = sphi 0, %s74
      %s77 = sphi 0, %s76
      %s91 = sphi 0, %s77
      %s95 = sphi 0, %s95
      %s97 = sphi 0, %s95
      %s98 = sphi 0, %s97
      %s112 = sphi 0, %s98
      %s116 = sphi 0, %s116
      %s118 = sphi 0, %s116
      %s119 = sphi 0, %s118
      %s133 = sphi 0, %s119
      %s137 = sphi 0, %s137
      %s139 = sphi 0, %s137
      %s140 = sphi 0, %s139
      %s154 = sphi 0, %s140
      %s160 = sphi 0, %s162
      %s163 = sphi 0, %s160
      %s164 = sphi 0, %s163
      %s180 = sphi 0, %s164
      %s186 = sphi 0, %s188
      %s189 = sphi 0, %s186
      %s190 = sphi 0, %s189
      %s206 = sphi 0, %s190
    $region4: #{composer_forward.1} parent=1 // loop_header_branch
      %22 = sbr.rel (%p20) target = $region8
    $region5: #{composer_forward.1} parent=1 // loop_body
      %s24 = ssub.s32 %s19, 1
      %s25 = ssub.s32 %s19, 2
      %s26 = sadd.s32 %s19, 1
      %s27 = ssub.s32 %s19, %s26
      %p28 = scmp.eq.s32.totalorder %s27, 0
      %s30 = sadd.s32 %s29, 1
      %s31 = scalar_select %p28, %s29, %s30
      %p34 = pneg %p28
      %p35 = scmp.eq.s32.totalorder %s19, 1
      %p36 = por %p34, %p35
      %p37 = scmp.ne.s32.totalorder %s29, %s32
      %p38 = scmp.eq.s32.totalorder %s19, 0
      %p39 = por %p37, %p38
      %p40 = scmp.ne.s32.totalorder %s29, %s32
      %p41 = scmp.eq.s32.totalorder %s24, 1
      %p42 = por %p40, %p41
      %p43 = scmp.ne.s32.totalorder %s32, %s33
      %p44 = scmp.eq.s32.totalorder %s24, 0
      %p45 = por %p43, %p44
      %p46 = scmp.ne.s32.totalorder %s32, %s33
      %p47 = scmp.eq.s32.totalorder %s25, 1
      %p48 = por %p46, %p47
      %p50 = scmp.ne.s32.totalorder %s33, %s49
      %p51 = scmp.eq.s32.totalorder %s25, 0
      %p52 = por %p50, %p51
      %s54 = sadd.s32 %s53, 1
      %p57 = scmp.eq.s32.totalorder %s19, 1
      %p58 = scmp.ne.s32.totalorder %s53, %s55
      %p59 = scmp.eq.s32.totalorder %s19, 0
      %p60 = por %p58, %p59
      %p61 = scmp.ne.s32.totalorder %s53, %s55
      %p62 = scmp.eq.s32.totalorder %s24, 1
      %p63 = por %p61, %p62
      %p64 = scmp.ne.s32.totalorder %s55, %s56
      %p65 = scmp.eq.s32.totalorder %s24, 0
      %p66 = por %p64, %p65
      %p67 = scmp.ne.s32.totalorder %s55, %s56
      %p68 = scmp.eq.s32.totalorder %s25, 1
      %p69 = por %p67, %p68
      %p71 = scmp.ne.s32.totalorder %s56, %s70
      %p72 = scmp.eq.s32.totalorder %s25, 0
      %p73 = por %p71, %p72
      %s75 = sadd.s32 %s74, 1
      %p78 = scmp.eq.s32.totalorder %s19, 1
      %p79 = scmp.ne.s32.totalorder %s74, %s76
      %p80 = scmp.eq.s32.totalorder %s19, 0
      %p81 = por %p79, %p80
      %p82 = scmp.ne.s32.totalorder %s74, %s76
      %p83 = scmp.eq.s32.totalorder %s24, 1
      %p84 = por %p82, %p83
      %p85 = scmp.ne.s32.totalorder %s76, %s77
      %p86 = scmp.eq.s32.totalorder %s24, 0
      %p87 = por %p85, %p86
      %p88 = scmp.ne.s32.totalorder %s76, %s77
      %p89 = scmp.eq.s32.totalorder %s25, 1
      %p90 = por %p88, %p89
      %p92 = scmp.ne.s32.totalorder %s77, %s91
      %p93 = scmp.eq.s32.totalorder %s25, 0
      %p94 = por %p92, %p93
      %s96 = sadd.s32 %s95, 1
      %p99 = scmp.eq.s32.totalorder %s19, 1
      %p100 = scmp.ne.s32.totalorder %s95, %s97
      %p101 = scmp.eq.s32.totalorder %s19, 0
      %p102 = por %p100, %p101
      %p103 = scmp.ne.s32.totalorder %s95, %s97
      %p104 = scmp.eq.s32.totalorder %s24, 1
      %p105 = por %p103, %p104
      %p106 = scmp.ne.s32.totalorder %s97, %s98
      %p107 = scmp.eq.s32.totalorder %s24, 0
      %p108 = por %p106, %p107
      %p109 = scmp.ne.s32.totalorder %s97, %s98
      %p110 = scmp.eq.s32.totalorder %s25, 1
      %p111 = por %p109, %p110
      %p113 = scmp.ne.s32.totalorder %s98, %s112
      %p114 = scmp.eq.s32.totalorder %s25, 0
      %p115 = por %p113, %p114
      %s117 = sadd.s32 %s116, 1
      %p120 = scmp.eq.s32.totalorder %s19, 1
      %p121 = scmp.ne.s32.totalorder %s116, %s118
      %p122 = scmp.eq.s32.totalorder %s19, 0
      %p123 = por %p121, %p122
      %p124 = scmp.ne.s32.totalorder %s116, %s118
      %p125 = scmp.eq.s32.totalorder %s24, 1
      %p126 = por %p124, %p125
      %p127 = scmp.ne.s32.totalorder %s118, %s119
      %p128 = scmp.eq.s32.totalorder %s24, 0
      %p129 = por %p127, %p128
      %p130 = scmp.ne.s32.totalorder %s118, %s119
      %p131 = scmp.eq.s32.totalorder %s25, 1
      %p132 = por %p130, %p131
      %p134 = scmp.ne.s32.totalorder %s119, %s133
      %p135 = scmp.eq.s32.totalorder %s25, 0
      %p136 = por %p134, %p135
      %s138 = sadd.s32 %s137, 1
      %p141 = scmp.eq.s32.totalorder %s19, 1
      %p142 = scmp.ne.s32.totalorder %s137, %s139
      %p143 = scmp.eq.s32.totalorder %s19, 0
      %p144 = por %p142, %p143
      %p145 = scmp.ne.s32.totalorder %s137, %s139
      %p146 = scmp.eq.s32.totalorder %s24, 1
      %p147 = por %p145, %p146
      %p148 = scmp.ne.s32.totalorder %s139, %s140
      %p149 = scmp.eq.s32.totalorder %s24, 0
      %p150 = por %p148, %p149
      %p151 = scmp.ne.s32.totalorder %s139, %s140
      %p152 = scmp.eq.s32.totalorder %s25, 1
      %p153 = por %p151, %p152
      %p155 = scmp.ne.s32.totalorder %s140, %s154
      %p156 = scmp.eq.s32.totalorder %s25, 0
      %p157 = por %p155, %p156
      %s158 = ssub.s32 %s19, %s26
      %p159 = scmp.eq.s32.totalorder %s158, 0
      %s161 = sadd.s32 %s160, 1
      %s162 = scalar_select %p159, %s160, %s161
      %p165 = pneg %p159
      %p166 = scmp.eq.s32.totalorder %s19, 1
      %p167 = por %p165, %p166
      %p168 = scmp.ne.s32.totalorder %s160, %s163
      %p169 = scmp.eq.s32.totalorder %s19, 0
      %p170 = por %p168, %p169
      %p171 = scmp.ne.s32.totalorder %s160, %s163
      %p172 = scmp.eq.s32.totalorder %s24, 1
      %p173 = por %p171, %p172
      %p174 = scmp.ne.s32.totalorder %s163, %s164
      %p175 = scmp.eq.s32.totalorder %s24, 0
      %p176 = por %p174, %p175
      %p177 = scmp.ne.s32.totalorder %s163, %s164
      %p178 = scmp.eq.s32.totalorder %s25, 1
      %p179 = por %p177, %p178
      %p181 = scmp.ne.s32.totalorder %s164, %s180
      %p182 = scmp.eq.s32.totalorder %s25, 0
      %p183 = por %p181, %p182
      %s184 = ssub.s32 %s19, %s26
      %p185 = scmp.eq.s32.totalorder %s184, 0
      %s187 = sadd.s32 %s186, 1
      %s188 = scalar_select %p185, %s186, %s187
      %p191 = pneg %p185
      %p192 = scmp.eq.s32.totalorder %s19, 1
      %p193 = por %p191, %p192
      %p194 = scmp.ne.s32.totalorder %s186, %s189
      %p195 = scmp.eq.s32.totalorder %s19, 0
      %p196 = por %p194, %p195
      %p197 = scmp.ne.s32.totalorder %s186, %s189
      %p198 = scmp.eq.s32.totalorder %s24, 1
      %p199 = por %p197, %p198
      %p200 = scmp.ne.s32.totalorder %s189, %s190
      %p201 = scmp.eq.s32.totalorder %s24, 0
      %p202 = por %p200, %p201
      %p203 = scmp.ne.s32.totalorder %s189, %s190
      %p204 = scmp.eq.s32.totalorder %s25, 1
      %p205 = por %p203, %p204
      %p207 = scmp.ne.s32.totalorder %s190, %s206
      %p208 = scmp.eq.s32.totalorder %s25, 0
      %p209 = por %p207, %p208
      %p210 = scmp.le.s32.totalorder 1, %s19
      %p211 = scmp.lt.s32.totalorder %s19, 3
      %p212 = pnand %p210, %p211
      %p213 = pneg %p212
      // Predicated region
      $region9: #{composer_forward.1} parent=5 // pred_check
        _
      $region10: #{composer_forward.1} parent=5 // pred_check_branch
        %215 = sbr.rel (%p212) target = $region12
      $region11: #{composer_forward.1} parent=5 // pred_region
        %s216 = ssub.s32 %s19, 1
        // Predicated region
        $region13: #{composer_forward.1} parent=11 // pred_check
          %p217 = pneg %p66
        $region14: #{composer_forward.1} parent=11 // pred_check_branch
          %219 = sbr.rel (%p217) target = $region16
        $region15: #{composer_forward.1} parent=11 // pred_region
          %s221 = ssub.s32 1024, 1024
          %222 = vsyncadd [#allocation3], %s221
          %s223 = sshll.u32 [#allocation2], 4
          %s224 = int_to_ptr.vmem [resolvable:$true] %s223
          %229 = dma.hbm_to_vmem [thread:$0]  %s1, 1024, %s224, [#allocation3], 64, 64, 4
        $region16: #{composer_forward.1} parent=11 // pred_fallthru
          _
        // Predicated region
        $region17: #{composer_forward.1} parent=11 // pred_check
          %p230 = pneg %p87
        $region18: #{composer_forward.1} parent=11 // pred_check_branch
          %232 = sbr.rel (%p230) target = $region20
        $region19: #{composer_forward.1} parent=11 // pred_region
          %s234 = ssub.s32 1024, 1024
          %235 = vsyncadd [#allocation6], %s234
          %s236 = sshll.u32 [#allocation5], 4
          %s237 = int_to_ptr.vmem [resolvable:$true] %s236
          %242 = dma.hbm_to_vmem [thread:$0]  %s2, 1024, %s237, [#allocation6], 64, 64, 4
        $region20: #{composer_forward.1} parent=11 // pred_fallthru
          _
        // Predicated region
        $region21: #{composer_forward.1} parent=11 // pred_check
          %p243 = pneg %p108
        $region22: #{composer_forward.1} parent=11 // pred_check_branch
          %245 = sbr.rel (%p243) target = $region24
        $region23: #{composer_forward.1} parent=11 // pred_region
          _
        $region24: #{composer_forward.1} parent=11 // pred_fallthru
          _
        // Predicated region
        $region25: #{composer_forward.1} parent=11 // pred_check
          %p246 = pneg %p129
        $region26: #{composer_forward.1} parent=11 // pred_check_branch
          %248 = sbr.rel (%p246) target = $region28
        $region27: #{composer_forward.1} parent=11 // pred_region
          %s250 = ssub.s32 1024, 1024
          %251 = vsyncadd [#allocation6], %s250
          %s252 = sshll.u32 [#allocation7], 4
          %s253 = int_to_ptr.vmem [resolvable:$true] %s252
          %258 = dma.hbm_to_vmem [thread:$0]  %s4, 1024, %s253, [#allocation6], 64, 64, 4
        $region28: #{composer_forward.1} parent=11 // pred_fallthru
          _
        // Predicated region
        $region29: #{composer_forward.1} parent=11 // pred_check
          %p259 = pneg %p150
        $region30: #{composer_forward.1} parent=11 // pred_check_branch
          %261 = sbr.rel (%p259) target = $region32
        $region31: #{composer_forward.1} parent=11 // pred_region
          _
        $region32: #{composer_forward.1} parent=11 // pred_fallthru
          _
      $region12: #{composer_forward.1} parent=5 // pred_fallthru
        _
      %p262 = scmp.lt.s32.totalorder %s19, 2
      // Predicated region
      $region33: #{composer_forward.1} parent=5 // pred_check
        %p263 = pneg %p262
      $region34: #{composer_forward.1} parent=5 // pred_check_branch
        %265 = sbr.rel (%p263) target = $region36
      $region35: #{composer_forward.1} parent=5 // pred_region
        // Predicated region
        $region37: #{composer_forward.1} parent=35 // pred_check
          %p266 = pneg %p39
        $region38: #{composer_forward.1} parent=35 // pred_check_branch
          %268 = sbr.rel (%p266) target = $region40
        $region39: #{composer_forward.1} parent=35 // pred_region
          %p269 = scmp.lt.s32.totalorder %s19, 1
          %s270 = scalar_select %p269, %s19, 1
          %s271 = smul.addr %s270, 2
          %s272 = smul.addr %s271, 4
          %s273 = scalar_lea.vmem %s0, %s272
        $region40: #{composer_forward.1} parent=35 // pred_fallthru
          _
      $region36: #{composer_forward.1} parent=5 // pred_fallthru
        _
      %p274 = scmp.le.s32.totalorder 1, %s19
      %p275 = scmp.lt.s32.totalorder %s19, 3
      %p276 = pnand %p274, %p275
      %p277 = pneg %p276
      // Predicated region
      $region41: #{composer_forward.1} parent=5 // pred_check
        _
      $region42: #{composer_forward.1} parent=5 // pred_check_branch
        %279 = sbr.rel (%p276) target = $region44
      $region43: #{composer_forward.1} parent=5 // pred_region
        %s280 = ssub.s32 %s19, 1
        // Predicated region
        $region45: #{composer_forward.1} parent=43 // pred_check
          %p281 = pneg %p66
        $region46: #{composer_forward.1} parent=43 // pred_check_branch
          %283 = sbr.rel (%p281) target = $region48
        $region47: #{composer_forward.1} parent=43 // pred_region
          %284 = dma.done [#allocation3], 1024
        $region48: #{composer_forward.1} parent=43 // pred_fallthru
          _
        // Predicated region
        $region49: #{composer_forward.1} parent=43 // pred_check
          %p285 = pneg %p87
        $region50: #{composer_forward.1} parent=43 // pred_check_branch
          %287 = sbr.rel (%p285) target = $region52
        $region51: #{composer_forward.1} parent=43 // pred_region
          %288 = dma.done [#allocation6], 1024
        $region52: #{composer_forward.1} parent=43 // pred_fallthru
          _
        // Predicated region
        $region53: #{composer_forward.1} parent=43 // pred_check
          %p289 = pneg %p129
        $region54: #{composer_forward.1} parent=43 // pred_check_branch
          %291 = sbr.rel (%p289) target = $region56
        $region55: #{composer_forward.1} parent=43 // pred_region
          %292 = dma.done [#allocation6], 1024
        $region56: #{composer_forward.1} parent=43 // pred_fallthru
          _
        %p293 = scmp.lt.s32.totalorder %s24, 1
        %s294 = scalar_select %p293, %s24, 1
        %s295 = smul.addr %s294, 2
        %s296 = smul.addr %s295, 4
        %s297 = scalar_lea.vmem %s0, %s296
        %p298 = pneg %p45
        %p299 = pneg %p42
        %p300 = pneg %p66
        %p301 = pneg %p63
        %p302 = pneg %p87
        %p303 = pneg %p84
        %p304 = pneg %p108
        %p305 = pneg %p105
        %p306 = pneg %p129
        %p307 = pneg %p126
        %p308 = pneg %p150
        %p309 = pneg %p147
        %p310 = pneg %p176
        %p311 = pneg %p173
        %p312 = scmp.lt.s32.totalorder %s24, 1
        %s313 = scalar_select %p312, %s24, 1
        %s314 = smul.addr %s313, 2
        %s315 = smul.addr %s314, 8
        %s316 = scalar_lea.vmem %s6, %s315
        %p317 = pneg %p202
        %p318 = pneg %p199
        %s319 = sand.u32 %s189, 1
        %s320 = scalar_lea.sflag [#allocation4], %s319
        %s321 = sand.u32 %s189, 1
        %s322 = smul.addr %s321, 8
        %s323 = scalar_lea.vmem [#allocation8], %s322
        %p324 = scmp.lt.s32.totalorder %s24, 1
        %s325 = scalar_select %p324, %s24, 1
        %s326 = smul.addr %s325, 2
        %s327 = smul.addr %s326, 4
        %s328 = scalar_lea.vmem %s0, %s327
        %p329 = scmp.lt.s32.totalorder %s24, 1
        %s330 = scalar_select %p329, %s24, 1
        %s331 = smul.addr %s330, 2
        %s332 = smul.addr %s331, 8
        %s333 = scalar_lea.vmem %s6, %s332
        %v335 = vld [vmem:[%s328] sm:$0xf]
        %v336 = vld [vmem:[%s328 + $0x4] sm:$0x1]
        %v337 = vld [vmem:[#allocation2] sm:$0xf]
        %v338 = vld [vmem:[#allocation2 + $0x4] sm:$0xf]
        %v339 = vld [vmem:[#allocation2 + $0x8] sm:$0xf]
        %v340 = vld [vmem:[#allocation2 + $0xc] sm:$0xf]
        %v341 = vld [vmem:[#allocation2 + $0x10] sm:$0xf]
        %v342 = vld [vmem:[#allocation2 + $0x14] sm:$0xf]
        %v343 = vld [vmem:[#allocation2 + $0x18] sm:$0xf]
        %v344 = vld [vmem:[#allocation2 + $0x1c] sm:$0xf]
        %v345 = vld [vmem:[#allocation2 + $0x20] sm:$0xf]
        %v346 = vld [vmem:[#allocation2 + $0x24] sm:$0xf]
        %v347 = vld [vmem:[#allocation2 + $0x28] sm:$0xf]
        %v348 = vld [vmem:[#allocation2 + $0x2c] sm:$0xf]
        %v349 = vld [vmem:[#allocation2 + $0x30] sm:$0xf]
        %v350 = vld [vmem:[#allocation2 + $0x34] sm:$0xf]
        %v351 = vld [vmem:[#allocation2 + $0x38] sm:$0xf]
        %v352 = vld [vmem:[#allocation2 + $0x3c] sm:$0xf]
        %v353 = vld [vmem:[#allocation5] sm:$0xf]
        %v354 = vld [vmem:[#allocation5 + $0x4] sm:$0xf]
        %v355 = vld [vmem:[#allocation5 + $0x8] sm:$0xf]
        %v356 = vld [vmem:[#allocation5 + $0xc] sm:$0xf]
        %v357 = vld [vmem:[#allocation5 + $0x10] sm:$0xf]
        %v358 = vld [vmem:[#allocation5 + $0x14] sm:$0xf]
        %v359 = vld [vmem:[#allocation5 + $0x18] sm:$0xf]
        %v360 = vld [vmem:[#allocation5 + $0x1c] sm:$0xf]
        %v361 = vld [vmem:[#allocation5 + $0x20] sm:$0xf]
        %v362 = vld [vmem:[#allocation5 + $0x24] sm:$0xf]
        %v363 = vld [vmem:[#allocation5 + $0x28] sm:$0xf]
        %v364 = vld [vmem:[#allocation5 + $0x2c] sm:$0xf]
        %v365 = vld [vmem:[#allocation5 + $0x30] sm:$0xf]
        %v366 = vld [vmem:[#allocation5 + $0x34] sm:$0xf]
        %v367 = vld [vmem:[#allocation5 + $0x38] sm:$0xf]
        %v368 = vld [vmem:[#allocation5 + $0x3c] sm:$0xf]
        %v371 = vunpack.c.l.b16 %v335
        %v372 = vunpack.c.l.b16 %v336
        %v373 = vpack.c.b16 %v372, %v371
        %v375 = vshrl.u32 %v373, 16
        %v377 = vshll.u32 %v373, 16
        %v379 = vrot.slane %v377, 1
        %v380 = vor.u32 %v375, %v379
        %v398 = vunpack.c.l.b16 %v353
        %v399 = vunpack.c.l.b16 %v354
        %v400 = vunpack.c.l.b16 %v355
        %v401 = vunpack.c.l.b16 %v356
        %v402 = vunpack.c.l.b16 %v357
        %v403 = vunpack.c.l.b16 %v358
        %v404 = vunpack.c.l.b16 %v359
        %v405 = vunpack.c.l.b16 %v360
        %v406 = vunpack.c.l.b16 %v361
        %v407 = vunpack.c.l.b16 %v362
        %v408 = vunpack.c.l.b16 %v363
        %v409 = vunpack.c.l.b16 %v364
        %v410 = vunpack.c.l.b16 %v365
        %v411 = vunpack.c.l.b16 %v366
        %v412 = vunpack.c.l.b16 %v367
        %v413 = vunpack.c.l.b16 %v368
        %v414 = vpack.c.b16 %v399, %v398
        %v415 = vpack.c.b16 %v401, %v400
        %v416 = vpack.c.b16 %v403, %v402
        %v417 = vpack.c.b16 %v405, %v404
        %v418 = vpack.c.b16 %v407, %v406
        %v419 = vpack.c.b16 %v409, %v408
        %v420 = vpack.c.b16 %v411, %v410
        %v421 = vpack.c.b16 %v413, %v412
        %430 = vmatprep.subr.bf16.mxu0 0
        %431 = vmatpush1.bf16.msra.mxu0 %v421
        %432 = vmatprep.subr.bf16.mxu0 0
        %433 = vmatpush1.bf16.msra.mxu0 %v420
        %434 = vmatprep.subr.bf16.mxu0 0
        %435 = vmatpush1.bf16.msra.mxu0 %v419
        %436 = vmatprep.subr.bf16.mxu0 0
        %437 = vmatpush1.bf16.msra.mxu0 %v418
        %438 = vmatprep.subr.bf16.mxu0 0
        %439 = vmatpush1.bf16.msra.mxu0 %v417
        %440 = vmatprep.subr.bf16.mxu0 0
        %441 = vmatpush1.bf16.msra.mxu0 %v416
        %442 = vmatprep.subr.bf16.mxu0 0
        %443 = vmatpush1.bf16.msra.mxu0 %v415
        %444 = vmatprep.subr.bf16.mxu0 0
        %445 = vmatpush1.bf16.msra.mxu0 %v414
        %446 = vmatprep.subr.bf16.mxu0 0
        %447 = vmatpush2.bf16.msra.mxu0 0
        %448 = vmatprep.subr.bf16.mxu0 0
        %449 = vmatpush2.bf16.msra.mxu0 0
        %450 = vmatprep.subr.bf16.mxu0 0
        %451 = vmatpush2.bf16.msra.mxu0 0
        %452 = vmatprep.subr.bf16.mxu0 0
        %453 = vmatpush2.bf16.msra.mxu0 0
        %454 = vmatprep.subr.bf16.mxu0 0
        %455 = vmatpush2.bf16.msra.mxu0 0
        %456 = vmatprep.subr.bf16.mxu0 0
        %457 = vmatpush2.bf16.msra.mxu0 0
        %458 = vmatprep.subr.bf16.mxu0 0
        %459 = vmatpush2.bf16.msra.mxu0 0
        %460 = vmatprep.subr.bf16.mxu0 0
        %461 = vmatpush2.bf16.msra.mxu0 0
        %462 = vmatprep.mubr.bf16.mxu0 0
        %463 = vmatmul.mubr.bf16.gmra.mxu0 %v380
        %v464 = vpop.f32.mrf.mxu0
        %v465 = vadd.f32 0.0, %v464
        %v466 = vpop.f32.mrf.mxu0
        %v467 = vpop.f32.mrf.mxu0
        %v468 = vadd.f32 0.0, %v467
        %v469 = vpop.f32.mrf.mxu0
        %470 = vdwg.mxu0
        %v488 = vunpack.c.l.b16 %v337
        %v489 = vunpack.c.l.b16 %v338
        %v490 = vunpack.c.l.b16 %v339
        %v491 = vunpack.c.l.b16 %v340
        %v492 = vunpack.c.l.b16 %v341
        %v493 = vunpack.c.l.b16 %v342
        %v494 = vunpack.c.l.b16 %v343
        %v495 = vunpack.c.l.b16 %v344
        %v496 = vunpack.c.l.b16 %v345
        %v497 = vunpack.c.l.b16 %v346
        %v498 = vunpack.c.l.b16 %v347
        %v499 = vunpack.c.l.b16 %v348
        %v500 = vunpack.c.l.b16 %v349
        %v501 = vunpack.c.l.b16 %v350
        %v502 = vunpack.c.l.b16 %v351
        %v503 = vunpack.c.l.b16 %v352
        %v504 = vpack.c.b16 %v489, %v488
        %v505 = vpack.c.b16 %v491, %v490
        %v506 = vpack.c.b16 %v493, %v492
        %v507 = vpack.c.b16 %v495, %v494
        %v508 = vpack.c.b16 %v497, %v496
        %v509 = vpack.c.b16 %v499, %v498
        %v510 = vpack.c.b16 %v501, %v500
        %v511 = vpack.c.b16 %v503, %v502
        %520 = vmatprep.subr.bf16.mxu0 0
        %521 = vmatpush1.bf16.msra.mxu0 %v511
        %522 = vmatprep.subr.bf16.mxu0 0
        %523 = vmatpush1.bf16.msra.mxu0 %v510
        %524 = vmatprep.subr.bf16.mxu0 0
        %525 = vmatpush1.bf16.msra.mxu0 %v509
        %526 = vmatprep.subr.bf16.mxu0 0
        %527 = vmatpush1.bf16.msra.mxu0 %v508
        %528 = vmatprep.subr.bf16.mxu0 0
        %529 = vmatpush1.bf16.msra.mxu0 %v507
        %530 = vmatprep.subr.bf16.mxu0 0
        %531 = vmatpush1.bf16.msra.mxu0 %v506
        %532 = vmatprep.subr.bf16.mxu0 0
        %533 = vmatpush1.bf16.msra.mxu0 %v505
        %534 = vmatprep.subr.bf16.mxu0 0
        %535 = vmatpush1.bf16.msra.mxu0 %v504
        %536 = vmatprep.subr.bf16.mxu0 0
        %537 = vmatpush2.bf16.msra.mxu0 0
        %538 = vmatprep.subr.bf16.mxu0 0
        %539 = vmatpush2.bf16.msra.mxu0 0
        %540 = vmatprep.subr.bf16.mxu0 0
        %541 = vmatpush2.bf16.msra.mxu0 0
        %542 = vmatprep.subr.bf16.mxu0 0
        %543 = vmatpush2.bf16.msra.mxu0 0
        %544 = vmatprep.subr.bf16.mxu0 0
        %545 = vmatpush2.bf16.msra.mxu0 0
        %546 = vmatprep.subr.bf16.mxu0 0
        %547 = vmatpush2.bf16.msra.mxu0 0
        %548 = vmatprep.subr.bf16.mxu0 0
        %549 = vmatpush2.bf16.msra.mxu0 0
        %550 = vmatprep.subr.bf16.mxu0 0
        %551 = vmatpush2.bf16.msra.mxu0 0
        %552 = vmatprep.mubr.bf16.mxu0 0
        %553 = vmatmul.mubr.bf16.gmra.mxu0 %v373
        %v554 = vpop.f32.mrf.mxu0
        %v555 = vadd.f32 %v465, %v554
        %v556 = vpop.f32.mrf.mxu0
        %v557 = vpop.f32.mrf.mxu0
        %v558 = vadd.f32 %v468, %v557
        %v559 = vpop.f32.mrf.mxu0
        %560 = vdwg.mxu0
        %v561 = vld [vmem:[%s3] sm:$0x1]
        %v563 = vlaneseq
        %v564 = vshrl.u32 %v563, 7
        %v565 = vsub.s32 0, %v564
        %v566 = vrot.slane %v561, %v565
        %v568 = vadd.f32 %v555, %v566
        %v569 = vadd.f32 %v558, %v566
        %570 = vst [vmem:[%s333] sm:$0xff] %v568
        %571 = vst [vmem:[%s333 + $0x8] sm:$0x1] %v569
        %v572 = vld [vmem:[#allocation7] sm:$0xf]
        %v573 = vld [vmem:[#allocation7 + $0x4] sm:$0xf]
        %v574 = vld [vmem:[#allocation7 + $0x8] sm:$0xf]
        %v575 = vld [vmem:[#allocation7 + $0xc] sm:$0xf]
        %v576 = vld [vmem:[#allocation7 + $0x10] sm:$0xf]
        %v577 = vld [vmem:[#allocation7 + $0x14] sm:$0xf]
        %v578 = vld [vmem:[#allocation7 + $0x18] sm:$0xf]
        %v579 = vld [vmem:[#allocation7 + $0x1c] sm:$0xf]
        %v580 = vld [vmem:[#allocation7 + $0x20] sm:$0xf]
        %v581 = vld [vmem:[#allocation7 + $0x24] sm:$0xf]
        %v582 = vld [vmem:[#allocation7 + $0x28] sm:$0xf]
        %v583 = vld [vmem:[#allocation7 + $0x2c] sm:$0xf]
        %v584 = vld [vmem:[#allocation7 + $0x30] sm:$0xf]
        %v585 = vld [vmem:[#allocation7 + $0x34] sm:$0xf]
        %v586 = vld [vmem:[#allocation7 + $0x38] sm:$0xf]
        %v587 = vld [vmem:[#allocation7 + $0x3c] sm:$0xf]
        %v588 = vld [vmem:[%s5] sm:$0x1]
        %v590 = vlaneseq
        %v591 = vshrl.u32 %v590, 7
        %v592 = vsub.s32 0, %v591
        %v593 = vrot.slane %v588, %v592
        %v611 = vunpack.c.l.b16 %v572
        %v612 = vunpack.c.l.b16 %v573
        %v613 = vunpack.c.l.b16 %v574
        %v614 = vunpack.c.l.b16 %v575
        %v615 = vunpack.c.l.b16 %v576
        %v616 = vunpack.c.l.b16 %v577
        %v617 = vunpack.c.l.b16 %v578
        %v618 = vunpack.c.l.b16 %v579
        %v619 = vunpack.c.l.b16 %v580
        %v620 = vunpack.c.l.b16 %v581
        %v621 = vunpack.c.l.b16 %v582
        %v622 = vunpack.c.l.b16 %v583
        %v623 = vunpack.c.l.b16 %v584
        %v624 = vunpack.c.l.b16 %v585
        %v625 = vunpack.c.l.b16 %v586
        %v626 = vunpack.c.l.b16 %v587
        %v627 = vpack.c.b16 %v612, %v611
        %v628 = vpack.c.b16 %v614, %v613
        %v629 = vpack.c.b16 %v616, %v615
        %v630 = vpack.c.b16 %v618, %v617
        %v631 = vpack.c.b16 %v620, %v619
        %v632 = vpack.c.b16 %v622, %v621
        %v633 = vpack.c.b16 %v624, %v623
        %v634 = vpack.c.b16 %v626, %v625
        %643 = vmatprep.subr.bf16.mxu0 0
        %644 = vmatpush1.bf16.msra.mxu0 %v634
        %645 = vmatprep.subr.bf16.mxu0 0
        %646 = vmatpush1.bf16.msra.mxu0 %v633
        %647 = vmatprep.subr.bf16.mxu0 0
        %648 = vmatpush1.bf16.msra.mxu0 %v632
        %649 = vmatprep.subr.bf16.mxu0 0
        %650 = vmatpush1.bf16.msra.mxu0 %v631
        %651 = vmatprep.subr.bf16.mxu0 0
        %652 = vmatpush1.bf16.msra.mxu0 %v630
        %653 = vmatprep.subr.bf16.mxu0 0
        %654 = vmatpush1.bf16.msra.mxu0 %v629
        %655 = vmatprep.subr.bf16.mxu0 0
        %656 = vmatpush1.bf16.msra.mxu0 %v628
        %657 = vmatprep.subr.bf16.mxu0 0
        %658 = vmatpush1.bf16.msra.mxu0 %v627
        %659 = vmatprep.subr.bf16.mxu0 0
        %660 = vmatpush2.bf16.msra.mxu0 0
        %661 = vmatprep.subr.bf16.mxu0 0
        %662 = vmatpush2.bf16.msra.mxu0 0
        %663 = vmatprep.subr.bf16.mxu0 0
        %664 = vmatpush2.bf16.msra.mxu0 0
        %665 = vmatprep.subr.bf16.mxu0 0
        %666 = vmatpush2.bf16.msra.mxu0 0
        %667 = vmatprep.subr.bf16.mxu0 0
        %668 = vmatpush2.bf16.msra.mxu0 0
        %669 = vmatprep.subr.bf16.mxu0 0
        %670 = vmatpush2.bf16.msra.mxu0 0
        %671 = vmatprep.subr.bf16.mxu0 0
        %672 = vmatpush2.bf16.msra.mxu0 0
        %673 = vmatprep.subr.bf16.mxu0 0
        %674 = vmatpush2.bf16.msra.mxu0 0
        %675 = vmatprep.mubr.bf16.mxu0 0
        %676 = vmatmul.mubr.bf16.gmra.mxu0 %v380
        %v677 = vpop.f32.mrf.mxu0
        %v678 = vadd.f32 %v593, %v677
        %v679 = vpop.f32.mrf.mxu0
        %v680 = vpop.f32.mrf.mxu0
        %v681 = vpop.f32.mrf.mxu0
        %682 = vdwg.mxu0
        %683 = vmax.xlane.f32.xlu0 %v678
        %v684 = vpop.xlane.xlu0 %683
        %v685 = vsub.f32 %v678, %v684
        %v686 = vmul.f32 %v685, 1.442695
        %v687 = vpow.pop %v686
        %688 = vadd.xlane.f32.xlu0 %v687
        %v689 = vpop.xlane.xlu0 %688
        %v690 = vrcp.pop %v689
        %v691 = vmul.f32 %v687, %v690
        %692 = vst [vmem:[%s323] sm:$0xff] %v691
        %p693 = scmp.lt.s32.totalorder %s24, 1
        %s694 = scalar_select %p693, %s24, 1
        %s695 = smul.addr %s694, 2
        %s696 = smul.addr %s695, 8
        %s697 = scalar_lea.vmem %s6, %s696
        %s698 = sand.u32 %s189, 1
        %s699 = scalar_lea.sflag [#allocation4], %s698
        %s700 = sand.u32 %s189, 1
        %s701 = smul.addr %s700, 8
        %s702 = scalar_lea.vmem [#allocation8], %s701
        // Predicated region
        $region57: #{composer_forward.1} parent=43 // pred_check
          %p703 = pneg %p173
        $region58: #{composer_forward.1} parent=43 // pred_check_branch
          %705 = sbr.rel (%p703) target = $region60
        $region59: #{composer_forward.1} parent=43 // pred_region
          _
        $region60: #{composer_forward.1} parent=43 // pred_fallthru
          _
        // Predicated region
        $region61: #{composer_forward.1} parent=43 // pred_check
          %p706 = pneg %p199
        $region62: #{composer_forward.1} parent=43 // pred_check_branch
          %708 = sbr.rel (%p706) target = $region64
        $region63: #{composer_forward.1} parent=43 // pred_region
          %s710 = ssub.s32 128, 128
          %711 = vsyncadd %s699, %s710
          %s712 = smul.addr %s24, 128
          %s713 = scalar_lea.hbm %s7, %s712
          %s715 = sshll.u32 %s702, 4
          %s716 = int_to_ptr.vmem [resolvable:$true] %s715
          %718 = dma.vmem_to_hbm [thread:$0]  %s716, 128, %s713, %s699
        $region64: #{composer_forward.1} parent=43 // pred_fallthru
          _
      $region44: #{composer_forward.1} parent=5 // pred_fallthru
        _
      %p719 = scmp.le.s32.totalorder 2, %s19
      // Predicated region
      $region65: #{composer_forward.1} parent=5 // pred_check
        %p720 = pneg %p719
      $region66: #{composer_forward.1} parent=5 // pred_check_branch
        %722 = sbr.rel (%p720) target = $region68
      $region67: #{composer_forward.1} parent=5 // pred_region
        %s723 = ssub.s32 %s19, 2
        // Predicated region
        $region69: #{composer_forward.1} parent=67 // pred_check
          %p724 = pneg %p179
        $region70: #{composer_forward.1} parent=67 // pred_check_branch
          %726 = sbr.rel (%p724) target = $region72
        $region71: #{composer_forward.1} parent=67 // pred_region
          %p727 = scmp.lt.s32.totalorder %s25, 1
          %s728 = scalar_select %p727, %s25, 1
          %s729 = smul.addr %s728, 2
          %s730 = smul.addr %s729, 8
          %s731 = scalar_lea.vmem %s6, %s730
        $region72: #{composer_forward.1} parent=67 // pred_fallthru
          _
        // Predicated region
        $region73: #{composer_forward.1} parent=67 // pred_check
          %p732 = pneg %p205
        $region74: #{composer_forward.1} parent=67 // pred_check_branch
          %734 = sbr.rel (%p732) target = $region76
        $region75: #{composer_forward.1} parent=67 // pred_region
          %s735 = sand.u32 %s190, 1
          %s736 = scalar_lea.sflag [#allocation4], %s735
          %s737 = sand.u32 %s190, 1
          %s738 = smul.addr %s737, 8
          %s739 = scalar_lea.vmem [#allocation8], %s738
          %740 = dma.done %s736, 128
        $region76: #{composer_forward.1} parent=67 // pred_fallthru
          _
      $region68: #{composer_forward.1} parent=5 // pred_fallthru
        _
    $region6: #{composer_forward.1} parent=1 // loop_footer
      %s23 = sadd.s32 1, %s19
    $region7: #{composer_forward.1} parent=1 // loop_footer_branch
      %18 = sbr.rel target = $region3
    $region8: #{composer_forward.1} parent=1 // loop_exit
      _
    %741 = vsyncpa [#allocation3], 1
    %s742 = scalar_lea.sflag [#allocation3], 1
    %743 = vsyncpa %s742, 1
    %744 = vsyncpa [#allocation6], 1
    %745 = vsyncpa [#allocation4], 1
    %s746 = scalar_lea.sflag [#allocation4], 1
    %747 = vsyncpa %s746, 1

</llo_original>
